<compile_context>
chip_gen: v7x
topology: tpu7x:2x2x1
jax: 0.10.0
libtpu: 0.0.40
codegen_flags: <defaults>
</compile_context>

<pallas_src>
import functools
import math

import jax
import jax.numpy as jnp
from jax.experimental import pallas as pl
from jax.experimental.pallas import tpu as pltpu

# small shapes consistent with the module
B = 2        # batch
LQ = 8       # query length
LK = 8       # key / value length
DK = 32      # query / key depth
DV = 32      # value depth
TEMPERATURE = math.sqrt(DK)


def sdpa_kernel(q_ref, k_ref, v_ref, mask_ref, out_ref, attn_ref, *, inv_temperature):
    q = q_ref[...]        # (B*Lq, Dk)   batch folded into sublanes
    k = k_ref[...]        # (B*Lk, Dk)
    v = v_ref[...]        # (B*Lk, Dv)
    m = mask_ref[...]     # (B*Lq, B*Lk), 1.0 where masked (user mask + cross-batch)

    # scores = q @ k^T : single 2-D MXU matmul, contract on D, no transpose.
    s = jax.lax.dot_general(q, k, (((1,), (1,)), ((), ())),
                            preferred_element_type=jnp.float32)   # (B*Lq, B*Lk)
    s = s * inv_temperature
    s = jnp.where(m != 0.0, -jnp.inf, s)          # masked_fill(mask, -inf)

    # numerically-stable softmax over the (folded) key axis
    mx = jnp.max(s, axis=-1, keepdims=True)
    e = jnp.exp(s - mx)
    denom = jnp.sum(e, axis=-1, keepdims=True)
    p = e * pl.reciprocal(denom, approx=False)    # EUP reciprocal, exact
    # TODO(synk): attention dropout (p=0.1) is eval-mode identity; training-mode dropout not implemented.

    # output = attn @ v : single 2-D MXU matmul (cross-batch probs are 0).
    o = jnp.dot(p, v, preferred_element_type=jnp.float32)         # (B*Lq, Dv)

    out_ref[...] = o          # natural-layout full-block stores
    attn_ref[...] = p


def scaled_dot_product_attention(q, k, v, mask, temperature=TEMPERATURE):
    B_, Lq, Dk = q.shape
    _, Lk, Dv = v.shape

    # Fold batch into sublanes (layout-free: last dim unchanged).
    q2 = q.reshape(B_ * Lq, Dk)
    k2 = k.reshape(B_ * Lk, Dk)
    v2 = v.reshape(B_ * Lk, Dv)

    # Block-diagonal folded mask: cross-batch entries are always masked; the
    # diagonal blocks carry the user mask. Built once in the wrapper (cheap).
    same_batch = (jnp.arange(B_)[:, None, None, None]
                  == jnp.arange(B_)[None, None, :, None])          # (B,1,B,1)
    mask_folded = jnp.where(same_batch, mask[:, :, None, :], True)  # (B,Lq,B,Lk)
    mask_folded = mask_folded.reshape(B_ * Lq, B_ * Lk).astype(jnp.float32)

    vmem = pltpu.MemorySpace.VMEM
    out2, attn_folded = pl.pallas_call(
        functools.partial(sdpa_kernel, inv_temperature=1.0 / temperature),
        out_shape=(
            jax.ShapeDtypeStruct((B_ * Lq, Dv), jnp.float32),         # output (folded)
            jax.ShapeDtypeStruct((B_ * Lq, B_ * Lk), jnp.float32),    # attn  (folded)
        ),
        in_specs=[pl.BlockSpec(memory_space=vmem)] * 4,
        out_specs=(pl.BlockSpec(memory_space=vmem),
                   pl.BlockSpec(memory_space=vmem)),
    )(q2, k2, v2, mask_folded)

    out = out2.reshape(B_, Lq, Dv)
    # Extract the block-diagonal (per-batch) attention probabilities.
    attn_full = attn_folded.reshape(B_, Lq, B_, Lk)
    attn = attn_full[jnp.arange(B_), :, jnp.arange(B_), :]           # (B, Lq, Lk)
    return out, attn


def reference_sdpa(q, k, v, mask, temperature=TEMPERATURE):
    """Plain-JAX replica of the torch module forward (eval mode)."""
    attn = jnp.einsum("bqd,bkd->bqk", q, k) / temperature
    attn = jnp.where(mask, -jnp.inf, attn)
    attn = jax.nn.softmax(attn, axis=2)
    out = jnp.einsum("bqk,bkd->bqd", attn, v)
    return out, attn


if __name__ == "__main__":
    key = jax.random.PRNGKey(0)
    kq, kk, kv, km = jax.random.split(key, 4)

    q = jax.random.normal(kq, (B, LQ, DK), jnp.float32)
    k = jax.random.normal(kk, (B, LK, DK), jnp.float32)
    v = jax.random.normal(kv, (B, LK, DV), jnp.float32)
    # boolean mask: True = masked out (torch masked_fill convention)
    mask = jax.random.bernoulli(km, 0.2, (B, LQ, LK))
    mask = mask.at[..., 0].set(False)   # guarantee >=1 visible key per query row
    # NOTE: fully-masked rows produce NaN (matches torch masked_fill(-inf) + softmax).

    out, attn = scaled_dot_product_attention(q, k, v, mask)
    jax.block_until_ready((out, attn))

    ref_out, ref_attn = reference_sdpa(q, k, v, mask)
    assert jnp.allclose(attn, ref_attn, atol=1e-4, rtol=1e-4), "attention probs mismatch"
    assert jnp.allclose(out, ref_out, atol=1e-4, rtol=1e-4), "output mismatch"

    print("KERNEL_OK")
</pallas_src>

<mosaic_0001>
module attributes {stable_mosaic.version = 11 : i64} {
  func.func @sdpa_kernel(%arg0: memref<16x32xf32, #tpu.memory_space<vmem>>, %arg1: memref<16x32xf32, #tpu.memory_space<vmem>>, %arg2: memref<16x32xf32, #tpu.memory_space<vmem>>, %arg3: memref<16x16xf32, #tpu.memory_space<vmem>>, %arg4: memref<16x32xf32, #tpu.memory_space<vmem>>, %arg5: memref<16x16xf32, #tpu.memory_space<vmem>>) attributes {dimension_semantics = [], scalar_prefetch = 0 : i64, scratch_operands = 0 : i64, tpu.core_type = #tpu.core_type<tc>} {
    %c0 = arith.constant 0 : index
    %c0_0 = arith.constant 0 : index
    %0 = vector.load %arg0[%c0, %c0_0] : memref<16x32xf32, #tpu.memory_space<vmem>>, vector<16x32xf32>
    %c0_1 = arith.constant 0 : index
    %c0_2 = arith.constant 0 : index
    %1 = vector.load %arg1[%c0_1, %c0_2] : memref<16x32xf32, #tpu.memory_space<vmem>>, vector<16x32xf32>
    %c0_3 = arith.constant 0 : index
    %c0_4 = arith.constant 0 : index
    %2 = vector.load %arg2[%c0_3, %c0_4] : memref<16x32xf32, #tpu.memory_space<vmem>>, vector<16x32xf32>
    %c0_5 = arith.constant 0 : index
    %c0_6 = arith.constant 0 : index
    %3 = vector.load %arg3[%c0_5, %c0_6] : memref<16x16xf32, #tpu.memory_space<vmem>>, vector<16x16xf32>
    %cst = arith.constant dense<0.000000e+00> : vector<16x16xf32>
    %4 = tpu.matmul %0, %1, %cst {dimension_numbers = #tpu.dot_dimension_numbers<[1], [1], [0], [0], [0, 0, 1, 0], [], []>} : vector<16x32xf32>, vector<16x32xf32>, vector<16x16xf32> -> vector<16x16xf32>
    %cst_7 = arith.constant 0.176776692 : f32
    %5 = vector.broadcast %cst_7 : f32 to vector<16x16xf32>
    %6 = arith.mulf %4, %5 : vector<16x16xf32>
    %cst_8 = arith.constant 0.000000e+00 : f32
    %7 = vector.broadcast %cst_8 : f32 to vector<16x16xf32>
    %8 = arith.cmpf one, %3, %7 : vector<16x16xf32>
    %cst_9 = arith.constant 0xFF800000 : f32
    %9 = vector.broadcast %cst_9 : f32 to vector<16x16xf32>
    %10 = arith.select %8, %9, %6 : vector<16x16xi1>, vector<16x16xf32>
    %cst_10 = arith.constant dense<0xFF800000> : vector<16xf32>
    %11 = vector.multi_reduction <maximumf>, %10, %cst_10 [1] : vector<16x16xf32> to vector<16xf32>
    %12 = vector.shape_cast %11 : vector<16xf32> to vector<16x1xf32>
    %13 = vector.broadcast %12 : vector<16x1xf32> to vector<16x16xf32>
    %14 = arith.subf %10, %13 : vector<16x16xf32>
    %15 = math.exp %14 : vector<16x16xf32>
    %cst_11 = arith.constant dense<0.000000e+00> : vector<16xf32>
    %16 = vector.multi_reduction <add>, %15, %cst_11 [1] : vector<16x16xf32> to vector<16xf32>
    %17 = vector.shape_cast %16 : vector<16xf32> to vector<16x1xf32>
    %18 = tpu.reciprocal %17 : vector<16x1xf32> -> vector<16x1xf32>
    %19 = vector.broadcast %18 : vector<16x1xf32> to vector<16x16xf32>
    %20 = arith.mulf %15, %19 : vector<16x16xf32>
    %cst_12 = arith.constant dense<0.000000e+00> : vector<16x32xf32>
    %21 = tpu.matmul %20, %2, %cst_12 {dimension_numbers = #tpu.dot_dimension_numbers<[1], [0], [0], [1], [0, 0, 1, 1], [], []>} : vector<16x16xf32>, vector<16x32xf32>, vector<16x32xf32> -> vector<16x32xf32>
    %c0_13 = arith.constant 0 : index
    %c0_14 = arith.constant 0 : index
    %22 = vector.load %arg4[%c0_13, %c0_14] : memref<16x32xf32, #tpu.memory_space<vmem>>, vector<16x32xf32>
    tpu.vector_store %arg4[%c0_13, %c0_14], %21 {strides = array<i32>} : memref<16x32xf32, #tpu.memory_space<vmem>>, vector<16x32xf32>,
    %c0_15 = arith.constant 0 : index
    %c0_16 = arith.constant 0 : index
    %23 = vector.load %arg5[%c0_15, %c0_16] : memref<16x16xf32, #tpu.memory_space<vmem>>, vector<16x16xf32>
    tpu.vector_store %arg5[%c0_15, %c0_16], %20 {strides = array<i32>} : memref<16x16xf32, #tpu.memory_space<vmem>>, vector<16x16xf32>,
    return
  }
}

</mosaic_0001>

<llo_original>
// kernel: tpu_custom_call.1
$region0: #{tpu_custom_call.1}
  #allocation0 [shape = 'u32[]', space=smem, size = 0x4, offset = 0x4, fixed_abs, tag = 'smem constant byte address 0x4 - core index']
  #allocation1 [shape = 'u32[144,128]{1,0:T(1,128)}', space=vmem, size = 0x12000, scoped, tag = 'internal scratch']
  %s0 = inlined_call_operand.hbm [shape: f32[16,32], index: 0, kind: input, shape index: {}]
  %s1 = inlined_call_operand.hbm [shape: f32[16,32], index: 1, kind: input, shape index: {}]
  %s2 = inlined_call_operand.hbm [shape: f32[16,32], index: 2, kind: input, shape index: {}]
  %s3 = inlined_call_operand.hbm [shape: f32[16,16], index: 3, kind: input, shape index: {}]
  %s4 = inlined_call_operand.hbm [shape: f32[16,32], index: 4, kind: output, shape index: {0}]
  %s5 = inlined_call_operand.hbm [shape: f32[16,16], index: 5, kind: output, shape index: {1}]
  %6 = xla_tuple %s4, %s5
  %s7 = sld [smem:[#allocation0]]
  $region50: #{tpu_custom_call.1} parent=0
    _
  %s9 = ssub.s32 1, %s7
  %s10 = scalar_select 0, %s9, %s7
  $region1: #{tpu_custom_call.1} parent=0
    #allocation2 [shape = 'u8[8192]{0}', space=vmem, size = 0x2000, scoped, tag = 'input window, operand 0, single buffered']
    #allocation3 [shape = 's32[1]{0}', space=sflag, size = 0x4, scoped, tag = 'scoped memory for tpu_custom_call.1']
    #allocation4 [shape = 's32[1]{0}', space=sflag, size = 0x4, scoped, tag = 'scoped memory for tpu_custom_call.1']
    #allocation5 [shape = 'u8[8192]{0}', space=vmem, size = 0x2000, scoped, tag = 'input window, operand 1, single buffered']
    #allocation6 [shape = 's32[1]{0}', space=sflag, size = 0x4, scoped, tag = 'scoped memory for tpu_custom_call.1']
    #allocation7 [shape = 'u8[8192]{0}', space=vmem, size = 0x2000, scoped, tag = 'input window, operand 2, single buffered']
    #allocation8 [shape = 'u8[8192]{0}', space=vmem, size = 0x2000, scoped, tag = 'input window, operand 3, single buffered']
    #allocation9 [shape = 's32[1]{0}', space=sflag, size = 0x4, scoped, tag = 'scoped memory for tpu_custom_call.1']
    #allocation10 [shape = 'u8[8192]{0}', space=vmem, size = 0x2000, scoped, tag = 'output window, operand 0, single buffered']
    #allocation11 [shape = 'u8[8192]{0}', space=vmem, size = 0x2000, scoped, tag = 'output window, operand 1, single buffered']
    #allocation12 [shape = 's32[1]{0}', space=sflag, size = 0x4, scoped, tag = 'scoped memory for tpu_custom_call.1']
    %11 = vsyncpa [#allocation3], 0
    %12 = vsyncpa [#allocation6], 0
    %13 = vsyncpa [#allocation9], 0
    %14 = vsyncpa [#allocation4], 0
    %15 = vsyncpa [#allocation12], 0
    // Predicated region
    $region2: #{tpu_custom_call.1} parent=1 // pred_check
      _
    $region3: #{tpu_custom_call.1} parent=1 // pred_check_branch
      %17 = sbr.rel (0) target = $region5
    $region4: #{tpu_custom_call.1} parent=1 // pred_region
      %s19 = ssub.s32 256, 256
      %20 = vsyncadd [#allocation3], %s19
      %s21 = sshll.u32 [#allocation2], 4
      %s22 = int_to_ptr.vmem [resolvable:$true] %s21
      %27 = dma.hbm_to_vmem [thread:$0]  %s0, 256, %s22, [#allocation3], 128, 128, 8
    $region5: #{tpu_custom_call.1} parent=1 // pred_fallthru
      _
    // Predicated region
    $region6: #{tpu_custom_call.1} parent=1 // pred_check
      _
    $region7: #{tpu_custom_call.1} parent=1 // pred_check_branch
      %29 = sbr.rel (0) target = $region9
    $region8: #{tpu_custom_call.1} parent=1 // pred_region
      %s31 = ssub.s32 256, 256
      %32 = vsyncadd [#allocation6], %s31
      %s33 = sshll.u32 [#allocation5], 4
      %s34 = int_to_ptr.vmem [resolvable:$true] %s33
      %39 = dma.hbm_to_vmem [thread:$0]  %s1, 256, %s34, [#allocation6], 128, 128, 8
    $region9: #{tpu_custom_call.1} parent=1 // pred_fallthru
      _
    // Predicated region
    $region10: #{tpu_custom_call.1} parent=1 // pred_check
      _
    $region11: #{tpu_custom_call.1} parent=1 // pred_check_branch
      %41 = sbr.rel (0) target = $region13
    $region12: #{tpu_custom_call.1} parent=1 // pred_region
      %s43 = ssub.s32 256, 256
      %44 = vsyncadd [#allocation6], %s43
      %s45 = sshll.u32 [#allocation7], 4
      %s46 = int_to_ptr.vmem [resolvable:$true] %s45
      %51 = dma.hbm_to_vmem [thread:$0]  %s2, 256, %s46, [#allocation6], 128, 128, 8
    $region13: #{tpu_custom_call.1} parent=1 // pred_fallthru
      _
    // Predicated region
    $region14: #{tpu_custom_call.1} parent=1 // pred_check
      _
    $region15: #{tpu_custom_call.1} parent=1 // pred_check_branch
      %53 = sbr.rel (0) target = $region17
    $region16: #{tpu_custom_call.1} parent=1 // pred_region
      %s55 = ssub.s32 256, 256
      %56 = vsyncadd [#allocation9], %s55
      %s57 = sshll.u32 [#allocation8], 4
      %s58 = int_to_ptr.vmem [resolvable:$true] %s57
      %63 = dma.hbm_to_vmem [thread:$0]  %s3, 256, %s58, [#allocation9], 128, 128, 8
    $region17: #{tpu_custom_call.1} parent=1 // pred_fallthru
      _
    // Predicated region
    $region18: #{tpu_custom_call.1} parent=1 // pred_check
      _
    $region19: #{tpu_custom_call.1} parent=1 // pred_check_branch
      %65 = sbr.rel (0) target = $region21
    $region20: #{tpu_custom_call.1} parent=1 // pred_region
      %66 = dma.done [#allocation3], 256
    $region21: #{tpu_custom_call.1} parent=1 // pred_fallthru
      _
    // Predicated region
    $region22: #{tpu_custom_call.1} parent=1 // pred_check
      _
    $region23: #{tpu_custom_call.1} parent=1 // pred_check_branch
      %68 = sbr.rel (0) target = $region25
    $region24: #{tpu_custom_call.1} parent=1 // pred_region
      %69 = dma.done [#allocation6], 256
    $region25: #{tpu_custom_call.1} parent=1 // pred_fallthru
      _
    // Predicated region
    $region26: #{tpu_custom_call.1} parent=1 // pred_check
      _
    $region27: #{tpu_custom_call.1} parent=1 // pred_check_branch
      %71 = sbr.rel (0) target = $region29
    $region28: #{tpu_custom_call.1} parent=1 // pred_region
      %72 = dma.done [#allocation6], 256
    $region29: #{tpu_custom_call.1} parent=1 // pred_fallthru
      _
    // Predicated region
    $region30: #{tpu_custom_call.1} parent=1 // pred_check
      _
    $region31: #{tpu_custom_call.1} parent=1 // pred_check_branch
      %74 = sbr.rel (0) target = $region33
    $region32: #{tpu_custom_call.1} parent=1 // pred_region
      %75 = dma.done [#allocation9], 256
    $region33: #{tpu_custom_call.1} parent=1 // pred_fallthru
      _
    %v76 = vld [vmem:[#allocation2] sm:$0xff]
    %v77 = vld [vmem:[#allocation2 + $0x8] sm:$0xff]
    %v78 = vld [vmem:[#allocation5] sm:$0xff]
    %v79 = vld [vmem:[#allocation5 + $0x8] sm:$0xff]
    %v80 = vld [vmem:[#allocation7] sm:$0xff]
    %v81 = vld [vmem:[#allocation7 + $0x8] sm:$0xff]
    %v82 = vld [vmem:[#allocation8] sm:$0xff]
    %v83 = vld [vmem:[#allocation8 + $0x8] sm:$0xff]
    %vm84 = vcmask 261120
    %v86 = vsel %vm84, %v76, 0
    %v89 = vsel %vm84, %v77, 0
    %v92 = vsel %vm84, %v78, 0
    %v95 = vsel %vm84, %v79, 0
    %97 = vmatprep.subr.mxu0 0.0
    %98 = vmatpush1.xpose.msra.mxu0 %v92
    %99 = vmatprep.subr.mxu0 0.0
    %100 = vmatpush1.xpose.msra.mxu0 %v95
    %101 = vmatprep.subr.mxu0 0.0
    %102 = vmatpush1.xpose.msra.mxu0 0.0
    %103 = vmatprep.subr.mxu0 0.0
    %104 = vmatpush1.xpose.msra.mxu0 0.0
    %105 = vmatprep.subr.mxu0 0.0
    %106 = vmatpush1.xpose.msra.mxu0 0.0
    %107 = vmatprep.subr.mxu0 0.0
    %108 = vmatpush1.xpose.msra.mxu0 0.0
    %109 = vmatprep.subr.mxu0 0.0
    %110 = vmatpush1.xpose.msra.mxu0 0.0
    %111 = vmatprep.subr.mxu0 0.0
    %112 = vmatpush1.xpose.msra.mxu0 0.0
    %113 = vmatprep.subr.mxu0 0.0
    %114 = vmatpush1.xpose.msra.mxu0 0.0
    %115 = vmatprep.subr.mxu0 0.0
    %116 = vmatpush1.xpose.msra.mxu0 0.0
    %117 = vmatprep.subr.mxu0 0.0
    %118 = vmatpush1.xpose.msra.mxu0 0.0
    %119 = vmatprep.subr.mxu0 0.0
    %120 = vmatpush1.xpose.msra.mxu0 0.0
    %121 = vmatprep.subr.mxu0 0.0
    %122 = vmatpush1.xpose.msra.mxu0 0.0
    %123 = vmatprep.subr.mxu0 0.0
    %124 = vmatpush1.xpose.msra.mxu0 0.0
    %125 = vmatprep.subr.mxu0 0.0
    %126 = vmatpush1.xpose.msra.mxu0 0.0
    %127 = vmatprep.subr.mxu0 0.0
    %128 = vmatpush1.xpose.msra.mxu0 0.0
    %129 = vmatprep.subr.mxu0 0.0
    %130 = vmatpush1.xpose.msra.mxu0 0.0
    %131 = vmatprep.subr.mxu0 0.0
    %132 = vmatpush1.xpose.msra.mxu0 0.0
    %133 = vmatprep.subr.mxu0 0.0
    %134 = vmatpush1.xpose.msra.mxu0 0.0
    %135 = vmatprep.subr.mxu0 0.0
    %136 = vmatpush1.xpose.msra.mxu0 0.0
    %137 = vmatprep.subr.mxu0 0.0
    %138 = vmatpush1.xpose.msra.mxu0 0.0
    %139 = vmatprep.subr.mxu0 0.0
    %140 = vmatpush1.xpose.msra.mxu0 0.0
    %141 = vmatprep.subr.mxu0 0.0
    %142 = vmatpush1.xpose.msra.mxu0 0.0
    %143 = vmatprep.subr.mxu0 0.0
    %144 = vmatpush1.xpose.msra.mxu0 0.0
    %145 = vmatprep.subr.mxu0 0.0
    %146 = vmatpush1.xpose.msra.mxu0 0.0
    %147 = vmatprep.subr.mxu0 0.0
    %148 = vmatpush1.xpose.msra.mxu0 0.0
    %149 = vmatprep.subr.mxu0 0.0
    %150 = vmatpush1.xpose.msra.mxu0 0.0
    %151 = vmatprep.subr.mxu0 0.0
    %152 = vmatpush1.xpose.msra.mxu0 0.0
    %153 = vmatprep.subr.mxu0 0.0
    %154 = vmatpush1.xpose.msra.mxu0 0.0
    %155 = vmatprep.subr.mxu0 0.0
    %156 = vmatpush1.xpose.msra.mxu0 0.0
    %157 = vmatprep.subr.mxu0 0.0
    %158 = vmatpush1.xpose.msra.mxu0 0.0
    %159 = vmatprep.subr.mxu0 0.0
    %160 = vmatpush1.xpose.msra.mxu0 0.0
    %161 = vmatprep.mubr.f32.mxu0 0.0
    %162 = vmatmul.mubr.f32.gmra.mrb[0].mxu0 %v86
    %v163 = vpop.f32.mrb[0].mxu0
    %v164 = vadd.f32 0.0, %v163
    %v165 = vpop.f32.mrb[0].mxu0
    %166 = vmatprep.mubr.f32.mxu0 0.0
    %167 = vmatmul.mubr.f32.gmra.mrb[0].mxu0 %v89
    %v168 = vpop.f32.mrb[0].mxu0
    %v169 = vadd.f32 0.0, %v168
    %v170 = vpop.f32.mrb[0].mxu0
    %171 = vdwg.mxu0
    %v172 = vmul.f32 %v164, 0.17677669
    %v173 = vmul.f32 %v169, 0.17677669
    %vm174 = vcmp.ne.f32.partialorder %v82, 0.0
    %vm175 = vcmp.ne.f32.partialorder %v83, 0.0
    %v176 = vsel %vm174, -inf, %v172
    %v177 = vsel %vm175, -inf, %v173
    %vm178 = vcmask 130048
    %v179 = vsel %vm178, %v176, -inf
    %180 = vmax.xlane.f32.xlu0 %v179
    %v181 = vpop.xlane.xlu0 %180
    %v182 = vsel %vm178, %v177, -inf
    %183 = vmax.xlane.f32.xlu0 %v182
    %v184 = vpop.xlane.xlu0 %183
    %v185 = vsub.f32 %v176, %v181
    %v186 = vsub.f32 %v177, %v184
    %v187 = vmul.f32 %v185, 1.442695
    %v188 = vpow.pop %v187
    %v189 = vmul.f32 %v186, 1.442695
    %v190 = vpow.pop %v189
    %v191 = vsel %vm178, %v188, 0.0
    %192 = vadd.xlane.f32.xlu0 %v191
    %v193 = vpop.xlane.xlu0 %192
    %v194 = vsel %vm178, %v190, 0.0
    %195 = vadd.xlane.f32.xlu0 %v194
    %v196 = vpop.xlane.xlu0 %195
    %v197 = vrcp.pop %v193
    %v198 = vrcp.pop %v196
    %v199 = vmul.f32 %v188, %v197
    %v200 = vmul.f32 %v190, %v198
    %v202 = vsel %vm178, %v199, 0
    %v205 = vsel %vm178, %v200, 0
    %207 = vmatprep.subr.mxu0 0.0
    %208 = vmatpush1.msra.mxu0 %v80
    %209 = vmatprep.subr.mxu0 0.0
    %210 = vmatpush1.msra.mxu0 %v81
    %211 = vmatprep.subr.mxu0 0.0
    %212 = vmatpush1.msra.mxu0 0.0
    %213 = vmatprep.subr.mxu0 0.0
    %214 = vmatpush1.msra.mxu0 0.0
    %215 = vmatprep.subr.mxu0 0.0
    %216 = vmatpush1.msra.mxu0 0.0
    %217 = vmatprep.subr.mxu0 0.0
    %218 = vmatpush1.msra.mxu0 0.0
    %219 = vmatprep.subr.mxu0 0.0
    %220 = vmatpush1.msra.mxu0 0.0
    %221 = vmatprep.subr.mxu0 0.0
    %222 = vmatpush1.msra.mxu0 0.0
    %223 = vmatprep.subr.mxu0 0.0
    %224 = vmatpush1.msra.mxu0 0.0
    %225 = vmatprep.subr.mxu0 0.0
    %226 = vmatpush1.msra.mxu0 0.0
    %227 = vmatprep.subr.mxu0 0.0
    %228 = vmatpush1.msra.mxu0 0.0
    %229 = vmatprep.subr.mxu0 0.0
    %230 = vmatpush1.msra.mxu0 0.0
    %231 = vmatprep.subr.mxu0 0.0
    %232 = vmatpush1.msra.mxu0 0.0
    %233 = vmatprep.subr.mxu0 0.0
    %234 = vmatpush1.msra.mxu0 0.0
    %235 = vmatprep.subr.mxu0 0.0
    %236 = vmatpush1.msra.mxu0 0.0
    %237 = vmatprep.subr.mxu0 0.0
    %238 = vmatpush1.msra.mxu0 0.0
    %239 = vmatprep.subr.mxu0 0.0
    %240 = vmatpush1.msra.mxu0 0.0
    %241 = vmatprep.subr.mxu0 0.0
    %242 = vmatpush1.msra.mxu0 0.0
    %243 = vmatprep.subr.mxu0 0.0
    %244 = vmatpush1.msra.mxu0 0.0
    %245 = vmatprep.subr.mxu0 0.0
    %246 = vmatpush1.msra.mxu0 0.0
    %247 = vmatprep.subr.mxu0 0.0
    %248 = vmatpush1.msra.mxu0 0.0
    %249 = vmatprep.subr.mxu0 0.0
    %250 = vmatpush1.msra.mxu0 0.0
    %251 = vmatprep.subr.mxu0 0.0
    %252 = vmatpush1.msra.mxu0 0.0
    %253 = vmatprep.subr.mxu0 0.0
    %254 = vmatpush1.msra.mxu0 0.0
    %255 = vmatprep.subr.mxu0 0.0
    %256 = vmatpush1.msra.mxu0 0.0
    %257 = vmatprep.subr.mxu0 0.0
    %258 = vmatpush1.msra.mxu0 0.0
    %259 = vmatprep.subr.mxu0 0.0
    %260 = vmatpush1.msra.mxu0 0.0
    %261 = vmatprep.subr.mxu0 0.0
    %262 = vmatpush1.msra.mxu0 0.0
    %263 = vmatprep.subr.mxu0 0.0
    %264 = vmatpush1.msra.mxu0 0.0
    %265 = vmatprep.subr.mxu0 0.0
    %266 = vmatpush1.msra.mxu0 0.0
    %267 = vmatprep.subr.mxu0 0.0
    %268 = vmatpush1.msra.mxu0 0.0
    %269 = vmatprep.subr.mxu0 0.0
    %270 = vmatpush1.msra.mxu0 0.0
    %271 = vmatprep.mubr.f32.mxu0 0.0
    %272 = vmatmul.mubr.f32.gmra.mrb[0].mxu0 %v202
    %v273 = vpop.f32.mrb[0].mxu0
    %v274 = vadd.f32 0.0, %v273
    %v275 = vpop.f32.mrb[0].mxu0
    %276 = vmatprep.mubr.f32.mxu0 0.0
    %277 = vmatmul.mubr.f32.gmra.mrb[0].mxu0 %v205
    %v278 = vpop.f32.mrb[0].mxu0
    %v279 = vadd.f32 0.0, %v278
    %v280 = vpop.f32.mrb[0].mxu0
    %281 = vdwg.mxu0
    %282 = vst.msk [vmem:[#allocation10] sm:$0xff] %vm84, %v274
    %283 = vst.msk [vmem:[#allocation10 + $0x8] sm:$0xff] %vm84, %v279
    %284 = vst.msk [vmem:[#allocation11] sm:$0xff] %vm178, %v199
    %285 = vst.msk [vmem:[#allocation11 + $0x8] sm:$0xff] %vm178, %v200
    // Predicated region
    $region34: #{tpu_custom_call.1} parent=1 // pred_check
      _
    $region35: #{tpu_custom_call.1} parent=1 // pred_check_branch
      %287 = sbr.rel (0) target = $region37
    $region36: #{tpu_custom_call.1} parent=1 // pred_region
      %s289 = ssub.s32 256, 256
      %290 = vsyncadd [#allocation4], %s289
      %s291 = sshll.u32 [#allocation10], 4
      %s292 = int_to_ptr.vmem [resolvable:$true] %s291
      %297 = dma.vmem_to_hbm [thread:$0]  %s292, 256, %s4, [#allocation4], 128, 128, 8
    $region37: #{tpu_custom_call.1} parent=1 // pred_fallthru
      _
    // Predicated region
    $region38: #{tpu_custom_call.1} parent=1 // pred_check
      _
    $region39: #{tpu_custom_call.1} parent=1 // pred_check_branch
      %299 = sbr.rel (0) target = $region41
    $region40: #{tpu_custom_call.1} parent=1 // pred_region
      %s301 = ssub.s32 256, 256
      %302 = vsyncadd [#allocation12], %s301
      %s303 = sshll.u32 [#allocation11], 4
      %s304 = int_to_ptr.vmem [resolvable:$true] %s303
      %309 = dma.vmem_to_hbm [thread:$0]  %s304, 256, %s5, [#allocation12], 128, 128, 8
    $region41: #{tpu_custom_call.1} parent=1 // pred_fallthru
      _
    // Predicated region
    $region42: #{tpu_custom_call.1} parent=1 // pred_check
      _
    $region43: #{tpu_custom_call.1} parent=1 // pred_check_branch
      %311 = sbr.rel (0) target = $region45
    $region44: #{tpu_custom_call.1} parent=1 // pred_region
      %312 = dma.done [#allocation4], 256
    $region45: #{tpu_custom_call.1} parent=1 // pred_fallthru
      _
    // Predicated region
    $region46: #{tpu_custom_call.1} parent=1 // pred_check
      _
    $region47: #{tpu_custom_call.1} parent=1 // pred_check_branch
      %314 = sbr.rel (0) target = $region49
    $region48: #{tpu_custom_call.1} parent=1 // pred_region
      %315 = dma.done [#allocation12], 256
    $region49: #{tpu_custom_call.1} parent=1 // pred_fallthru
      _
    %316 = vsyncpa [#allocation3], 1
    %317 = vsyncpa [#allocation6], 1
    %318 = vsyncpa [#allocation9], 1
    %319 = vsyncpa [#allocation4], 1
    %320 = vsyncpa [#allocation12], 1

</llo_original>
